<compile_context>
chip_gen: v5e
topology: v5e:2x2
jax: 0.10.0
libtpu: 0.0.40
codegen_flags: <defaults>
</compile_context>

<pallas_src>
import jax
import jax.numpy as jnp
from jax.experimental import pallas as pl
from jax.experimental.pallas import tpu as pltpu

_SQRT_2_OVER_PI = 0.7978845608028654  # sqrt(2/pi)


def _gelu_tanh(x):
  # F.gelu(x, approximate='tanh')
  return 0.5 * x * (1.0 + jnp.tanh(_SQRT_2_OVER_PI * (x + 0.044715 * x * x * x)))


def _gemma_mlp_kernel(x_ref, wgu_ref, wd_ref, o_ref, acc_ref):
  # Grid: (M_tiles, I_tiles).
  #   x_ref:   (tm, H)        compute dtype (bf16 by default)
  #   wgu_ref: (2, H, ti)     stacked [gate; up] weight tile
  #   wd_ref:  (ti, H)        down-projection weight tile
  #   o_ref:   (tm, H)
  #   acc_ref: (tm, H) f32 accumulator, resident across the reduction axis j.
  j = pl.program_id(1)

  @pl.when(j == 0)
  def _():
    acc_ref[...] = jnp.zeros_like(acc_ref)

  x = x_ref[...]
  gate = jnp.dot(x, wgu_ref[0], preferred_element_type=jnp.float32)
  up = jnp.dot(x, wgu_ref[1], preferred_element_type=jnp.float32)
  gate = _gelu_tanh(gate)                            # f32 epilogue (v5e-safe)
  fuse = (gate * up).astype(wd_ref.dtype)            # bf16 back onto the MXU
  acc_ref[...] += jnp.dot(fuse, wd_ref[...], preferred_element_type=jnp.float32)

  @pl.when(j == pl.num_programs(1) - 1)
  def _():
    o_ref[...] = acc_ref[...].astype(o_ref.dtype)


def prepare_gemma_mlp_weights(w_gate, w_up, w_down, dtype=jnp.bfloat16):
  """Transform nn.Linear-style (out, in) weights ONCE at load time:
    * transpose to (in, out) so the per-call path does no weight copies,
    * stack gate+up into one (2, H, I) array (one DMA stream per grid step),
    * cast to bf16 by default (2x+ MXU throughput, half the HBM/VMEM traffic).
  Returns (wgu, wd_t): wgu (2, H, I), wd_t (I, H)."""
  wgu = jnp.stack([w_gate.T, w_up.T], axis=0)
  wd_t = w_down.T
  if dtype is not None:
    wgu = wgu.astype(dtype)
    wd_t = wd_t.astype(dtype)
  return wgu, wd_t


def _vmem_capacity_bytes() -> int:
  """Physical VMEM per TensorCore; fall back to 128 MiB (v5e/v6e) if unknown."""
  try:
    info = pltpu.get_tpu_info()
    cap = getattr(info, "vmem_capacity_bytes", None)
    if cap:
      return int(cap)
  except Exception:
    pass
  return 128 << 20


def _pick_ti(intermediate, ti_request, fits):
  """Largest intermediate tile that (a) divides I, (b) is a multiple of 128,
  (c) is <= ti_request and (d) fits the VMEM budget."""
  if intermediate <= ti_request:
    return intermediate                      # full-extent block is always legal
  start = ti_request - (ti_request % 128)
  cands = [k for k in range(start, 127, -128) if intermediate % k == 0]
  if not cands:
    # TODO(synk): pad I to a multiple of 128 at prepare time for odd sizes.
    return intermediate
  for k in cands:
    if fits(k):
      return k
  return cands[-1]                           # smallest legal tile; best effort


def gemma_mlp(x, wgu, wd_t, *, tm=512, ti=1024, vmem_limit_bytes=None):
  """Fused GemmaMLP forward.

  x:    (B, S, H) activations.
  wgu:  (2, H, I) stacked pre-transposed gate/up weights.
  wd_t: (I, H) pre-transposed down-projection weight.
  (Both from prepare_gemma_mlp_weights().)
  """
  B, S, H = x.shape
  assert wgu.ndim == 3 and wgu.shape[0] == 2 and wgu.shape[1] == H
  I = wgu.shape[2]
  assert wd_t.shape == (I, H)

  compute_dtype = wgu.dtype
  out_dtype = x.dtype
  wbytes = jnp.dtype(compute_dtype).itemsize
  cbytes = wbytes
  obytes = jnp.dtype(out_dtype).itemsize

  M = B * S
  x2d = x.reshape(M, H)
  if x2d.dtype != compute_dtype:
    x2d = x2d.astype(compute_dtype)          # bf16 activations on the MXU path

  # Row tile: multiple of the sublane packing for the compute dtype
  # (8 rows for f32, 16 for bf16, 32 for int8/fp8) — avoids masked stores.
  row_mult = max(8, 32 // cbytes)
  tm = max(row_mult, (tm // row_mult) * row_mult)
  tm_eff = min(tm, pl.cdiv(M, row_mult) * row_mult)
  m_pad = pl.cdiv(M, tm_eff) * tm_eff
  if m_pad != M:
    x2d = jnp.pad(x2d, ((0, m_pad - M), (0, 0)))

  # VMEM budget: ~48 MiB on v7x (64 MiB/TC), ~96 MiB on v5e/v6e (128 MiB).
  vmem_budget = (_vmem_capacity_bytes() * 3) // 4

  def _footprint(ti_):
    w = 2 * 3 * H * ti_ * wbytes              # double-buffered gate+up+down tiles
    io = 2 * tm_eff * H * (cbytes + obytes)   # double-buffered x + out tiles
    acc = tm_eff * H * 4                      # f32 accumulator scratch
    tmp = 3 * tm_eff * ti_ * 4                # gate/up/fuse f32 temporaries
    return w + io + acc + tmp

  ti_eff = _pick_ti(I, ti, lambda k: _footprint(k) <= vmem_budget)
  grid = (m_pad // tm_eff, I // ti_eff)
  n_m_tiles = grid[0]

  # Raise the scoped VMEM limit only when the tile footprint needs it; never
  # above the per-generation budget (so a v7x request stays under 64 MiB).
  est = _footprint(ti_eff)
  if vmem_limit_bytes is None and est > (16 << 20):
    vmem_limit_bytes = int(min(est + (8 << 20), vmem_budget))

  # Advisory cost estimate (weights are re-streamed once per M tile).
  cost = pl.CostEstimate(
      flops=6 * m_pad * H * I,                 # gate + up + down matmuls
      transcendentals=m_pad * I,               # tanh per gate element
      bytes_accessed=(n_m_tiles * 3 * H * I * wbytes
                      + m_pad * H * (cbytes + obytes)))

  # TODO(synk): v7x decode (single M tile) — split the I reduction across the
  # two TensorCores (core_parallel / pl.core_map) and sum the partials.
  # TODO(synk): mark x/out BlockSpecs pipeline_mode=pl.Buffered(1) (j-invariant)
  # to reclaim VMEM on v7x once per-BlockSpec buffering is plumbed through.
  out2d = pl.pallas_call(
      _gemma_mlp_kernel,
      out_shape=jax.ShapeDtypeStruct((m_pad, H), out_dtype),
      grid_spec=pltpu.PrefetchScalarGridSpec(
          num_scalar_prefetch=0,
          grid=grid,
          in_specs=[
              pl.BlockSpec((tm_eff, H), lambda i, j: (i, 0)),        # x row tile
              pl.BlockSpec((2, H, ti_eff), lambda i, j: (0, 0, j)),  # gate+up tile
              pl.BlockSpec((ti_eff, H), lambda i, j: (j, 0)),        # down tile
          ],
          out_specs=pl.BlockSpec((tm_eff, H), lambda i, j: (i, 0)),
          scratch_shapes=[pltpu.VMEM((tm_eff, H), jnp.float32)],
      ),
      compiler_params=pltpu.CompilerParams(
          dimension_semantics=("parallel", "arbitrary"),
          vmem_limit_bytes=vmem_limit_bytes),
      cost_estimate=cost,
  )(x2d, wgu, wd_t)

  if m_pad != M:
    out2d = out2d[:M]
  return out2d.reshape(B, S, H)


def gemma_mlp_ref(x, w_gate, w_up, w_down):
  """Pure-JAX f32 reference of the PyTorch forward (nn.Linear-style weights)."""
  gate = jnp.einsum("bsh,ih->bsi", x, w_gate)
  gate = _gelu_tanh(gate)
  up = jnp.einsum("bsh,ih->bsi", x, w_up)
  fuse = gate * up
  return jnp.einsum("bsi,hi->bsh", fuse, w_down)


if __name__ == "__main__":
  batch, seq, hidden, intermediate = 2, 8, 32, 64

  key = jax.random.PRNGKey(0)
  kx, kg, ku, kd = jax.random.split(key, 4)

  x = jax.random.normal(kx, (batch, seq, hidden), dtype=jnp.float32)
  # nn.Linear weights: (out_features, in_features), no bias.
  w_gate = jax.random.normal(kg, (intermediate, hidden), dtype=jnp.float32) * 0.05
  w_up = jax.random.normal(ku, (intermediate, hidden), dtype=jnp.float32) * 0.05
  w_down = jax.random.normal(kd, (hidden, intermediate), dtype=jnp.float32) * 0.05

  ref = gemma_mlp_ref(x, w_gate, w_up, w_down)

  # 1) Full-precision path (strict numerical check against the reference).
  wgu_f32, wd_f32 = prepare_gemma_mlp_weights(w_gate, w_up, w_down,
                                              dtype=jnp.float32)
  out_f32 = jax.block_until_ready(gemma_mlp(x, wgu_f32, wd_f32))
  assert out_f32.shape == (batch, seq, hidden)
  assert jnp.allclose(out_f32, ref, atol=1e-5, rtol=1e-5)

  # 2) Default bf16 MXU path (production setting, looser tolerance).
  wgu_bf, wd_bf = prepare_gemma_mlp_weights(w_gate, w_up, w_down)
  out_bf = jax.block_until_ready(gemma_mlp(x, wgu_bf, wd_bf))
  assert out_bf.shape == (batch, seq, hidden)
  assert jnp.allclose(out_bf.astype(jnp.float32), ref, atol=3e-2, rtol=3e-2)

  # 3) M = batch*seq not a multiple of the row packing: exercises row padding.
  x2 = jax.random.normal(key, (3, 5, hidden), dtype=jnp.float32)
  out2 = jax.block_until_ready(gemma_mlp(x2, wgu_bf, wd_bf))
  ref2 = gemma_mlp_ref(x2, w_gate, w_up, w_down)
  assert out2.shape == (3, 5, hidden)
  assert jnp.allclose(out2.astype(jnp.float32), ref2, atol=3e-2, rtol=3e-2)

  print("KERNEL_OK")
</pallas_src>

<mosaic_0001>
module attributes {stable_mosaic.version = 11 : i64} {
  func.func @_gemma_mlp_kernel(%arg0: i32, %arg1: i32, %arg2: memref<16x32xf32, #tpu.memory_space<vmem>>, %arg3: memref<2x32x64xf32, #tpu.memory_space<vmem>>, %arg4: memref<64x32xf32, #tpu.memory_space<vmem>>, %arg5: memref<16x32xf32, #tpu.memory_space<vmem>>, %arg6: memref<16x32xf32, #tpu.memory_space<vmem>>) attributes {dimension_semantics = [#tpu.dimension_semantics<parallel>, #tpu.dimension_semantics<arbitrary>], iteration_bounds = array<i64: 1, 1>, scalar_prefetch = 0 : i64, scratch_operands = 1 : i64, tpu.core_type = #tpu.core_type<tc>, window_params = [{transform_indices = @transform_0, window_bounds = array<i64: 16, 32>}, {transform_indices = @transform_1, window_bounds = array<i64: 2, 32, 64>}, {transform_indices = @transform_2, window_bounds = array<i64: 64, 32>}, {transform_indices = @transform_3, window_bounds = array<i64: 16, 32>}]} {
    %c0_i32 = arith.constant 0 : i32
    %0 = arith.cmpi eq, %arg1, %c0_i32 : i32
    %1 = arith.extui %0 : i1 to i32
    %c0_i32_0 = arith.constant 0 : i32
    %2 = arith.cmpi ne, %1, %c0_i32_0 : i32
    scf.if %2 {
      %cst_21 = arith.constant 0.000000e+00 : f32
      %32 = vector.broadcast %cst_21 : f32 to vector<16x32xf32>
      %c0_22 = arith.constant 0 : index
      %c0_23 = arith.constant 0 : index
      %33 = vector.load %arg6[%c0_22, %c0_23] : memref<16x32xf32, #tpu.memory_space<vmem>>, vector<16x32xf32>
      tpu.vector_store %arg6[%c0_22, %c0_23], %32 {strides = array<i32>} : memref<16x32xf32, #tpu.memory_space<vmem>>, vector<16x32xf32>,
    } else {
    }
    %c0 = arith.constant 0 : index
    %c0_1 = arith.constant 0 : index
    %3 = vector.load %arg2[%c0, %c0_1] : memref<16x32xf32, #tpu.memory_space<vmem>>, vector<16x32xf32>
    %c0_2 = arith.constant 0 : index
    %c0_3 = arith.constant 0 : index
    %c0_4 = arith.constant 0 : index
    %4 = vector.load %arg3[%c0_2, %c0_3, %c0_4] : memref<2x32x64xf32, #tpu.memory_space<vmem>>, vector<1x32x64xf32>
    %5 = vector.shape_cast %4 : vector<1x32x64xf32> to vector<32x64xf32>
    %cst = arith.constant dense<0.000000e+00> : vector<16x64xf32>
    %6 = tpu.matmul %3, %5, %cst {dimension_numbers = #tpu.dot_dimension_numbers<[1], [0], [0], [1], [0, 0, 1, 1], [], []>} : vector<16x32xf32>, vector<32x64xf32>, vector<16x64xf32> -> vector<16x64xf32>
    %c1 = arith.constant 1 : index
    %c0_5 = arith.constant 0 : index
    %c0_6 = arith.constant 0 : index
    %7 = vector.load %arg3[%c1, %c0_5, %c0_6] : memref<2x32x64xf32, #tpu.memory_space<vmem>>, vector<1x32x64xf32>
    %8 = vector.shape_cast %7 : vector<1x32x64xf32> to vector<32x64xf32>
    %cst_7 = arith.constant dense<0.000000e+00> : vector<16x64xf32>
    %9 = tpu.matmul %3, %8, %cst_7 {dimension_numbers = #tpu.dot_dimension_numbers<[1], [0], [0], [1], [0, 0, 1, 1], [], []>} : vector<16x32xf32>, vector<32x64xf32>, vector<16x64xf32> -> vector<16x64xf32>
    %cst_8 = arith.constant 5.000000e-01 : f32
    %10 = vector.broadcast %cst_8 : f32 to vector<16x64xf32>
    %11 = arith.mulf %10, %6 : vector<16x64xf32>
    %cst_9 = arith.constant 4.471500e-02 : f32
    %12 = vector.broadcast %cst_9 : f32 to vector<16x64xf32>
    %13 = arith.mulf %12, %6 : vector<16x64xf32>
    %14 = arith.mulf %13, %6 : vector<16x64xf32>
    %15 = arith.mulf %14, %6 : vector<16x64xf32>
    %16 = arith.addf %6, %15 : vector<16x64xf32>
    %cst_10 = arith.constant 0.797884583 : f32
    %17 = vector.broadcast %cst_10 : f32 to vector<16x64xf32>
    %18 = arith.mulf %17, %16 : vector<16x64xf32>
    %19 = math.tanh %18 : vector<16x64xf32>
    %cst_11 = arith.constant 1.000000e+00 : f32
    %20 = vector.broadcast %cst_11 : f32 to vector<16x64xf32>
    %21 = arith.addf %20, %19 : vector<16x64xf32>
    %22 = arith.mulf %11, %21 : vector<16x64xf32>
    %23 = arith.mulf %22, %9 : vector<16x64xf32>
    %c0_12 = arith.constant 0 : index
    %c0_13 = arith.constant 0 : index
    %24 = vector.load %arg6[%c0_12, %c0_13] : memref<16x32xf32, #tpu.memory_space<vmem>>, vector<16x32xf32>
    %c0_14 = arith.constant 0 : index
    %c0_15 = arith.constant 0 : index
    %25 = vector.load %arg4[%c0_14, %c0_15] : memref<64x32xf32, #tpu.memory_space<vmem>>, vector<64x32xf32>
    %cst_16 = arith.constant dense<0.000000e+00> : vector<16x32xf32>
    %26 = tpu.matmul %23, %25, %cst_16 {dimension_numbers = #tpu.dot_dimension_numbers<[1], [0], [0], [1], [0, 0, 1, 1], [], []>} : vector<16x64xf32>, vector<64x32xf32>, vector<16x32xf32> -> vector<16x32xf32>
    %27 = arith.addf %24, %26 : vector<16x32xf32>
    %c0_17 = arith.constant 0 : index
    %c0_18 = arith.constant 0 : index
    %28 = vector.load %arg6[%c0_17, %c0_18] : memref<16x32xf32, #tpu.memory_space<vmem>>, vector<16x32xf32>
    tpu.vector_store %arg6[%c0_17, %c0_18], %27 {strides = array<i32>} : memref<16x32xf32, #tpu.memory_space<vmem>>, vector<16x32xf32>,
    %c0_i32_19 = arith.constant 0 : i32
    %29 = arith.cmpi eq, %arg1, %c0_i32_19 : i32
    %30 = arith.extui %29 : i1 to i32
    %c0_i32_20 = arith.constant 0 : i32
    %31 = arith.cmpi ne, %30, %c0_i32_20 : i32
    scf.if %31 {
      %c0_21 = arith.constant 0 : index
      %c0_22 = arith.constant 0 : index
      %32 = vector.load %arg6[%c0_21, %c0_22] : memref<16x32xf32, #tpu.memory_space<vmem>>, vector<16x32xf32>
      %c0_23 = arith.constant 0 : index
      %c0_24 = arith.constant 0 : index
      %33 = vector.load %arg5[%c0_23, %c0_24] : memref<16x32xf32, #tpu.memory_space<vmem>>, vector<16x32xf32>
      tpu.vector_store %arg5[%c0_23, %c0_24], %32 {strides = array<i32>} : memref<16x32xf32, #tpu.memory_space<vmem>>, vector<16x32xf32>,
    } else {
    }
    return
  }
  func.func @transform_0(%arg0: i32, %arg1: i32) -> (i32, i32) {
    %c0_i32 = arith.constant 0 : i32
    %c0_i32_0 = arith.constant 0 : i32
    return %arg0, %c0_i32 : i32, i32
  }
  func.func @transform_1(%arg0: i32, %arg1: i32) -> (i32, i32, i32) {
    %c0_i32 = arith.constant 0 : i32
    %c0_i32_0 = arith.constant 0 : i32
    %c0_i32_1 = arith.constant 0 : i32
    return %c0_i32, %c0_i32_0, %arg1 : i32, i32, i32
  }
  func.func @transform_2(%arg0: i32, %arg1: i32) -> (i32, i32) {
    %c0_i32 = arith.constant 0 : i32
    %c0_i32_0 = arith.constant 0 : i32
    return %arg1, %c0_i32 : i32, i32
  }
  func.func @transform_3(%arg0: i32, %arg1: i32) -> (i32, i32) {
    %c0_i32 = arith.constant 0 : i32
    %c0_i32_0 = arith.constant 0 : i32
    return %arg0, %c0_i32 : i32, i32
  }
}

</mosaic_0001>

<llo_original>
// kernel: tpu_custom_call.1
$region0: #{tpu_custom_call.1}
  #allocation0 [shape = 'u32[]', space=smem, size = 0x4, offset = 0x4, fixed_abs, tag = 'smem constant byte address 0x4 - core index']
  #allocation1 [shape = 'u32[72,128]{1,0:T(1,128)}', space=vmem, size = 0x9000, scoped, tag = 'internal scratch']
  #allocation2 [shape = 'f32[16,32]{1,0:T(8,128)}', space=vmem, size = 0x2000, scoped, tag = 'scratch operand']
  %s0 = inlined_call_operand.vmem [shape: f32[16,32], index: 0, kind: input, shape index: {}]
  %s1 = inlined_call_operand.vmem [shape: f32[2,32,64], index: 1, kind: input, shape index: {}]
  %s2 = inlined_call_operand.vmem [shape: f32[64,32], index: 2, kind: input, shape index: {}]
  %s3 = inlined_call_operand.hbm [shape: f32[16,32], index: 3, kind: output, shape index: {}]
  %s4 = sld [smem:[#allocation0]]
  $region30: #{tpu_custom_call.1} parent=0
    _
  %s6 = ssub.s32 1, %s4
  %s7 = scalar_select 0, %s6, %s4
  $region1: #{tpu_custom_call.1} parent=0
    #allocation3 [shape = 'u8[8192]{0}', space=vmem, size = 0x2000, scoped, tag = 'output window, operand 0, single buffered']
    #allocation4 [shape = 's32[1]{0}', space=sflag, size = 0x4, scoped, tag = 'scoped memory for tpu_custom_call.1']
    %8 = vsyncpa [#allocation4], 0
    // Predicated region
    $region2: #{tpu_custom_call.1} parent=1 // pred_check
      _
    $region3: #{tpu_custom_call.1} parent=1 // pred_check_branch
      %10 = sbr.rel (0) target = $region5
    $region4: #{tpu_custom_call.1} parent=1 // pred_region
      _
    $region5: #{tpu_custom_call.1} parent=1 // pred_fallthru
      _
    // Predicated region
    $region6: #{tpu_custom_call.1} parent=1 // pred_check
      _
    $region7: #{tpu_custom_call.1} parent=1 // pred_check_branch
      %12 = sbr.rel (0) target = $region9
    $region8: #{tpu_custom_call.1} parent=1 // pred_region
      _
    $region9: #{tpu_custom_call.1} parent=1 // pred_fallthru
      _
    // Predicated region
    $region10: #{tpu_custom_call.1} parent=1 // pred_check
      _
    $region11: #{tpu_custom_call.1} parent=1 // pred_check_branch
      %14 = sbr.rel (0) target = $region13
    $region12: #{tpu_custom_call.1} parent=1 // pred_region
      _
    $region13: #{tpu_custom_call.1} parent=1 // pred_fallthru
      _
    %p15 = scmp.eq.s32.totalorder 0, 0
    // Predicated region
    $region14: #{tpu_custom_call.1} parent=1 // pred_check
      %p16 = pneg %p15
    $region15: #{tpu_custom_call.1} parent=1 // pred_check_branch
      %18 = sbr.rel (%p16) target = $region17
    $region16: #{tpu_custom_call.1} parent=1 // pred_region
      %vm19 = vcmask 261120
      %20 = vst.msk [vmem:[#allocation2] sm:$0xff] %vm19, 0.0
      %21 = vst.msk [vmem:[#allocation2 + $0x8] sm:$0xff] %vm19, 0.0
    $region17: #{tpu_custom_call.1} parent=1 // pred_fallthru
      _
    %v22 = vld [vmem:[%s0] sm:$0xff]
    %v23 = vld [vmem:[%s0 + $0x8] sm:$0xff]
    %v24 = vld [vmem:[%s1] sm:$0xff]
    %v25 = vld [vmem:[%s1 + $0x8] sm:$0xff]
    %v26 = vld [vmem:[%s1 + $0x10] sm:$0xff]
    %v27 = vld [vmem:[%s1 + $0x18] sm:$0xff]
    %vm28 = vcmask 261120
    %v30 = vsel %vm28, %v22, 0
    %v33 = vsel %vm28, %v23, 0
    %35 = vmatpush.msra.mxu0 0.0
    %36 = vmatpush.msra.mxu0 0.0
    %37 = vmatpush.msra.mxu0 0.0
    %38 = vmatpush.msra.mxu0 0.0
    %39 = vmatpush.msra.mxu0 0.0
    %40 = vmatpush.msra.mxu0 0.0
    %41 = vmatpush.msra.mxu0 0.0
    %42 = vmatpush.msra.mxu0 0.0
    %43 = vmatpush.msra.mxu0 0.0
    %44 = vmatpush.msra.mxu0 0.0
    %45 = vmatpush.msra.mxu0 0.0
    %46 = vmatpush.msra.mxu0 0.0
    %47 = vmatpush.msra.mxu0 %v27
    %48 = vmatpush.msra.mxu0 %v26
    %49 = vmatpush.msra.mxu0 %v25
    %50 = vmatpush.msra.mxu0 %v24
    %51 = vmatmul.f32.gmra.mxu0 %v30
    %v52 = vpop.f32.mrf.mxu0
    %v53 = vadd.f32 0.0, %v52
    %54 = vmatmul.f32.gmra.mxu0 %v33
    %v55 = vpop.f32.mrf.mxu0
    %v56 = vadd.f32 0.0, %v55
    %57 = vdwg.mxu0
    %s58 = scalar_lea.vmem %s1, 32
    %v59 = vld [vmem:[%s58] sm:$0xff]
    %v60 = vld [vmem:[%s58 + $0x8] sm:$0xff]
    %v61 = vld [vmem:[%s58 + $0x10] sm:$0xff]
    %v62 = vld [vmem:[%s58 + $0x18] sm:$0xff]
    %63 = vmatpush.msra.mxu0 0.0
    %64 = vmatpush.msra.mxu0 0.0
    %65 = vmatpush.msra.mxu0 0.0
    %66 = vmatpush.msra.mxu0 0.0
    %67 = vmatpush.msra.mxu0 0.0
    %68 = vmatpush.msra.mxu0 0.0
    %69 = vmatpush.msra.mxu0 0.0
    %70 = vmatpush.msra.mxu0 0.0
    %71 = vmatpush.msra.mxu0 0.0
    %72 = vmatpush.msra.mxu0 0.0
    %73 = vmatpush.msra.mxu0 0.0
    %74 = vmatpush.msra.mxu0 0.0
    %75 = vmatpush.msra.mxu0 %v62
    %76 = vmatpush.msra.mxu0 %v61
    %77 = vmatpush.msra.mxu0 %v60
    %78 = vmatpush.msra.mxu0 %v59
    %79 = vmatmul.f32.gmra.mxu0 %v30
    %v80 = vpop.f32.mrf.mxu0
    %v81 = vadd.f32 0.0, %v80
    %82 = vmatmul.f32.gmra.mxu0 %v33
    %v83 = vpop.f32.mrf.mxu0
    %v84 = vadd.f32 0.0, %v83
    %85 = vdwg.mxu0
    %v86 = vmul.f32 %v53, 0.5
    %v87 = vmul.f32 %v56, 0.5
    %v88 = vmul.f32 %v53, 0.044715
    %v89 = vmul.f32 %v56, 0.044715
    %v90 = vmul.f32 %v88, %v53
    %v91 = vmul.f32 %v89, %v56
    %v92 = vmul.f32 %v90, %v53
    %v93 = vmul.f32 %v91, %v56
    %v94 = vadd.f32 %v53, %v92
    %v95 = vadd.f32 %v56, %v93
    %v96 = vmul.f32 %v94, 0.7978846
    %v97 = vmul.f32 %v95, 0.7978846
    %v98 = vtanh.pop %v96
    %v99 = vtanh.pop %v97
    %v100 = vadd.f32 %v98, 1.0
    %v101 = vadd.f32 %v99, 1.0
    %v102 = vmul.f32 %v86, %v100
    %v103 = vmul.f32 %v87, %v101
    %v104 = vmul.f32 %v102, %v81
    %v105 = vmul.f32 %v103, %v84
    %v106 = vld [vmem:[#allocation2] sm:$0xff]
    %v107 = vld [vmem:[#allocation2 + $0x8] sm:$0xff]
    %v108 = vld [vmem:[%s2] sm:$0xff]
    %v109 = vld [vmem:[%s2 + $0x8] sm:$0xff]
    %v110 = vld [vmem:[%s2 + $0x10] sm:$0xff]
    %v111 = vld [vmem:[%s2 + $0x18] sm:$0xff]
    %v112 = vld [vmem:[%s2 + $0x20] sm:$0xff]
    %v113 = vld [vmem:[%s2 + $0x28] sm:$0xff]
    %v114 = vld [vmem:[%s2 + $0x30] sm:$0xff]
    %v115 = vld [vmem:[%s2 + $0x38] sm:$0xff]
    %vm116 = vcmask 523264
    %v118 = vsel %vm116, %v104, 0
    %v121 = vsel %vm116, %v105, 0
    %123 = vmatpush.msra.mxu0 0.0
    %124 = vmatpush.msra.mxu0 0.0
    %125 = vmatpush.msra.mxu0 0.0
    %126 = vmatpush.msra.mxu0 0.0
    %127 = vmatpush.msra.mxu0 0.0
    %128 = vmatpush.msra.mxu0 0.0
    %129 = vmatpush.msra.mxu0 0.0
    %130 = vmatpush.msra.mxu0 0.0
    %131 = vmatpush.msra.mxu0 %v115
    %132 = vmatpush.msra.mxu0 %v114
    %133 = vmatpush.msra.mxu0 %v113
    %134 = vmatpush.msra.mxu0 %v112
    %135 = vmatpush.msra.mxu0 %v111
    %136 = vmatpush.msra.mxu0 %v110
    %137 = vmatpush.msra.mxu0 %v109
    %138 = vmatpush.msra.mxu0 %v108
    %139 = vmatmul.f32.gmra.mxu0 %v118
    %v140 = vpop.f32.mrf.mxu0
    %v141 = vadd.f32 0.0, %v140
    %142 = vmatmul.f32.gmra.mxu0 %v121
    %v143 = vpop.f32.mrf.mxu0
    %v144 = vadd.f32 0.0, %v143
    %145 = vdwg.mxu0
    %v146 = vadd.f32 %v106, %v141
    %v147 = vadd.f32 %v107, %v144
    %148 = vst.msk [vmem:[#allocation2] sm:$0xff] %vm28, %v146
    %149 = vst.msk [vmem:[#allocation2 + $0x8] sm:$0xff] %vm28, %v147
    // Predicated region
    $region18: #{tpu_custom_call.1} parent=1 // pred_check
      %p150 = pneg %p15
    $region19: #{tpu_custom_call.1} parent=1 // pred_check_branch
      %152 = sbr.rel (%p150) target = $region21
    $region20: #{tpu_custom_call.1} parent=1 // pred_region
      %v153 = vld [vmem:[#allocation2] sm:$0xff]
      %v154 = vld [vmem:[#allocation2 + $0x8] sm:$0xff]
      %155 = vst.msk [vmem:[#allocation3] sm:$0xff] %vm28, %v153
      %156 = vst.msk [vmem:[#allocation3 + $0x8] sm:$0xff] %vm28, %v154
    $region21: #{tpu_custom_call.1} parent=1 // pred_fallthru
      _
    // Predicated region
    $region22: #{tpu_custom_call.1} parent=1 // pred_check
      _
    $region23: #{tpu_custom_call.1} parent=1 // pred_check_branch
      %158 = sbr.rel (0) target = $region25
    $region24: #{tpu_custom_call.1} parent=1 // pred_region
      %160 = vsyncadd [#allocation4], 0
      %s161 = sshll.u32 [#allocation3], 4
      %s162 = int_to_ptr.vmem [resolvable:$true] %s161
      %s163 = sshll.u32 %s3, 4
      %s164 = int_to_ptr.hbm [resolvable:$true] %s163
      %169 = dma.vmem_to_hbm [thread:$0]  %s162, 256, %s164, [#allocation4], 128, 128, 8
    $region25: #{tpu_custom_call.1} parent=1 // pred_fallthru
      _
    // Predicated region
    $region26: #{tpu_custom_call.1} parent=1 // pred_check
      _
    $region27: #{tpu_custom_call.1} parent=1 // pred_check_branch
      %171 = sbr.rel (0) target = $region29
    $region28: #{tpu_custom_call.1} parent=1 // pred_region
      %173 = dma.done [#allocation4], 256
    $region29: #{tpu_custom_call.1} parent=1 // pred_fallthru
      _
    %174 = vsyncpa [#allocation4], 1

</llo_original>
